<compile_context>
chip_gen: v5e
topology: v5e:2x2
jax: 0.10.0
libtpu: 0.0.40
codegen_flags: <defaults>
</compile_context>

<pallas_src>
import jax
import jax.numpy as jnp
from jax.experimental import pallas as pl
from jax.experimental.pallas import tpu as pltpu

_LANE = 128
_WIDTHS = (4096, 2048, 1024, 512, 256, 128)   # lane-dense candidate widths

# ~4 MiB per block buffer (raised from 1 MiB): the kernel is pure HBM
# streaming, so larger blocks only amortize the fixed per-step cost.  16 MiB
# live (in + out, double-buffered) fits under the explicit VMEM limit below on
# v5e/v6e (128 MiB physical) and v7x (64 MiB physical).
_TARGET_BLOCK_BYTES = 4 << 20
# Keep >= 4 grid steps when possible so dimension_semantics=("parallel",) can
# shard the copy across both v7x TensorCores (v5e/v6e are single-TC).
_MIN_GRID_STEPS = 4
# Explicit scoped-VMEM request; must exceed v5e's 16 MiB scoped default to
# allow the 4 MiB blocks.  Clamped to half the local chip's physical VMEM.
_VMEM_LIMIT_TARGET = 40 << 20

# Ragged path: a handful of in-flight HBM->HBM DMAs saturates HBM bandwidth on
# all generations; chunk starts are aligned to the (8,128) tile quantum.
_DMA_CHUNKS = 4
_DMA_QUANTUM = 8 * _LANE


def _min_sublanes(dtype) -> int:
    """Minimum sublane granule: 8 (f32), 16 (bf16/f16), 32 (int8/fp8)."""
    itemsize = jnp.dtype(dtype).itemsize
    if itemsize >= 4:
        return 8
    return 8 * (4 // itemsize)


def _vmem_limit_bytes(block_bytes: int) -> int:
    """Scoped-VMEM request covering the double-buffered copy footprint."""
    need = 4 * block_bytes + (2 << 20)       # in + out, double-buffered, + slack
    try:
        cap = pltpu.get_tpu_info().vmem_capacity_bytes  # 128 MiB v5e/v6e, 64 MiB v7x
    except Exception:
        cap = 64 << 20                        # conservative (v7x-sized) default
    return int(min(max(need, _VMEM_LIMIT_TARGET), cap // 2))


def _choose_block_rows(rows: int, width: int, itemsize: int, sub: int) -> int:
    """Pick the block row count for the (rows, width) streaming copy."""
    if rows <= sub:
        # Tiny input: a single full-array block (full-dim blocks are exempt
        # from the min-tile divisibility rule).
        return rows
    # ~_TARGET_BLOCK_BYTES per block buffer ...
    target_rows = max(sub, _TARGET_BLOCK_BYTES // (width * itemsize))
    # ... but keep >= _MIN_GRID_STEPS grid steps when the array allows it, so
    # the parallel grid axis can be split across both v7x TensorCores.
    target_rows = min(target_rows, max(sub, pl.cdiv(rows, _MIN_GRID_STEPS)))
    # Round to the dtype's sublane granule; partial tail blocks are handled by
    # Pallas via masked stores.
    block_rows = max(sub, (target_rows // sub) * sub)
    return min(block_rows, (rows // sub) * sub)


def _copy_kernel(x_ref, o_ref):
    # Identity copy of the current tile: the entire hot path of a reshape.
    o_ref[...] = x_ref[...]


def _pallas_copy_2d(mat):
    """Materializing copy of a 2-D array (rows, width) with width % 128 == 0."""
    rows, width = mat.shape
    dtype = mat.dtype
    itemsize = jnp.dtype(dtype).itemsize
    sub = _min_sublanes(dtype)

    block_rows = _choose_block_rows(rows, width, itemsize, sub)
    block_bytes = block_rows * width * itemsize
    grid = (pl.cdiv(rows, block_rows),)

    # NOTE: pipeline_mode=pl.Buffered(3) on the input spec can recover a few
    # percent at v7x HBM rates; left at the default depth-2 to keep the VMEM
    # footprint generation-independent.
    return pl.pallas_call(
        _copy_kernel,
        out_shape=jax.ShapeDtypeStruct((rows, width), dtype),
        grid=grid,
        in_specs=[pl.BlockSpec((block_rows, width), lambda i: (i, 0))],
        out_specs=pl.BlockSpec((block_rows, width), lambda i: (i, 0)),
        compiler_params=pltpu.CompilerParams(
            dimension_semantics=("parallel",),
            vmem_limit_bytes=_vmem_limit_bytes(block_bytes)),
        cost_estimate=pl.CostEstimate(
            flops=0,
            transcendentals=0,
            bytes_accessed=2 * rows * width * itemsize),
    )(mat)


def _chunk_bounds(total: int, max_chunks: int = _DMA_CHUNKS):
    """Static (start, size) chunks; starts aligned to the (8,128) tile quantum."""
    chunk = pl.cdiv(total, max_chunks)
    chunk = max(_DMA_QUANTUM, pl.cdiv(chunk, _DMA_QUANTUM) * _DMA_QUANTUM)
    bounds, start = [], 0
    while start < total:
        size = min(chunk, total - start)
        bounds.append((start, size))
        start += size
    return tuple(bounds)


def _pallas_copy_1d_dma(flat):
    """Copy a flat buffer with a few in-flight HBM->HBM DMAs (no VMEM staging).

    DMA lengths are not lane-quantized, so ragged (non-multiple-of-128) element
    counts need no pad/slice passes, and the copy is insensitive to VMEM size.
    """
    total = flat.shape[0]
    itemsize = jnp.dtype(flat.dtype).itemsize
    bounds = _chunk_bounds(total)

    def kernel(x_hbm, o_hbm, sem):
        copies = []
        for i, (lo, sz) in enumerate(bounds):          # static unroll, few chunks
            cp = pltpu.make_async_copy(
                x_hbm.at[pl.ds(lo, sz)], o_hbm.at[pl.ds(lo, sz)], sem.at[i])
            cp.start()
            copies.append(cp)
        for cp in copies:                              # all chunks stay in flight
            cp.wait()

    return pl.pallas_call(
        kernel,
        out_shape=jax.ShapeDtypeStruct((total,), flat.dtype),
        in_specs=[pl.BlockSpec(memory_space=pl.ANY)],
        out_specs=pl.BlockSpec(memory_space=pl.ANY),
        scratch_shapes=[pltpu.SemaphoreType.DMA((len(bounds),))],
        cost_estimate=pl.CostEstimate(
            flops=0,
            transcendentals=0,
            bytes_accessed=2 * total * itemsize),
    )(flat)


def pallas_reshape(x, dims):
    """Reshape `x` to `dims`, moving the elements through a Pallas copy kernel."""
    total = x.size
    if total == 0:
        return x.reshape(dims)        # nothing to copy

    flat = x.reshape(-1)              # metadata only; row-major order preserved

    # Widest lane-dense width that factors the element count exactly
    # -> full-width, unmasked stores and zero host-side pad or slice passes.
    width = next((w for w in _WIDTHS if total % w == 0), None)
    if width is not None:
        out = _pallas_copy_2d(flat.reshape(total // width, width))
        return out.reshape(dims)

    # Ragged element count (not a multiple of 128): chunked HBM->HBM DMA copy.
    try:
        out = _pallas_copy_1d_dma(flat)
    except Exception:
        # TODO(synk): compatibility fallback (pad + copy + strip) for
        # environments without HBM->HBM DMA; costs two extra HBM passes.
        padded = pl.cdiv(total, _LANE) * _LANE
        padded_flat = jnp.pad(flat, (0, padded - total))
        out = _pallas_copy_2d(
            padded_flat.reshape(padded // _LANE, _LANE)).reshape(-1)[:total]
    return out.reshape(dims)


if __name__ == "__main__":
    key = jax.random.PRNGKey(0)

    # 1) Small NCHW conv-style tensor, aligned path (2048 elements).
    #    Module instance equivalent: Reshape(dims=(2, 4, 256)).
    x = jax.random.normal(key, (2, 4, 16, 16), dtype=jnp.float32)
    dims = (2, 4, 256)
    y = pallas_reshape(x, dims)
    jax.block_until_ready(y)
    y_ref = x.reshape(dims)
    assert y.shape == tuple(dims), (y.shape, dims)
    assert y.dtype == x.dtype
    assert bool(jnp.array_equal(y, y_ref))

    # 2) bf16 input exercising the dtype-aware sublane granule (16).
    xb = jax.random.normal(key, (4, 8, 32, 32), dtype=jnp.bfloat16)
    yb = pallas_reshape(xb, (4, 8 * 32 * 32))
    jax.block_until_ready(yb)
    assert bool(jnp.array_equal(yb, xb.reshape(4, 8 * 32 * 32)))

    # 3) Ragged element count (6*11*32 = 2112, not a multiple of 128):
    #    exercises the chunked HBM->HBM DMA path (no pad / slice passes).
    xr = jax.random.normal(key, (6, 11, 32), dtype=jnp.float32)
    yr = pallas_reshape(xr, (6, 352))
    jax.block_until_ready(yr)
    assert yr.shape == (6, 352) and yr.dtype == xr.dtype
    assert bool(jnp.array_equal(yr, xr.reshape(6, 352)))

    print("KERNEL_OK")
</pallas_src>

<mosaic_0001>
module attributes {stable_mosaic.version = 11 : i64} {
  func.func @_copy_kernel(%arg0: i32, %arg1: memref<1x2048xf32, #tpu.memory_space<vmem>>, %arg2: memref<1x2048xf32, #tpu.memory_space<vmem>>) attributes {dimension_semantics = [#tpu.dimension_semantics<parallel>], iteration_bounds = array<i64: 1>, scalar_prefetch = 0 : i64, scratch_operands = 0 : i64, tpu.core_type = #tpu.core_type<tc>, window_params = [{transform_indices = @transform_0, window_bounds = array<i64: 1, 2048>}, {transform_indices = @transform_1, window_bounds = array<i64: 1, 2048>}]} {
    %c0 = arith.constant 0 : index
    %c0_0 = arith.constant 0 : index
    %0 = vector.load %arg1[%c0, %c0_0] : memref<1x2048xf32, #tpu.memory_space<vmem>>, vector<1x2048xf32>
    %c0_1 = arith.constant 0 : index
    %c0_2 = arith.constant 0 : index
    %1 = vector.load %arg2[%c0_1, %c0_2] : memref<1x2048xf32, #tpu.memory_space<vmem>>, vector<1x2048xf32>
    tpu.vector_store %arg2[%c0_1, %c0_2], %0 {strides = array<i32>} : memref<1x2048xf32, #tpu.memory_space<vmem>>, vector<1x2048xf32>,
    return
  }
  func.func @transform_0(%arg0: i32) -> (i32, i32) {
    %c0_i32 = arith.constant 0 : i32
    %c0_i32_0 = arith.constant 0 : i32
    return %arg0, %c0_i32 : i32, i32
  }
  func.func @transform_1(%arg0: i32) -> (i32, i32) {
    %c0_i32 = arith.constant 0 : i32
    %c0_i32_0 = arith.constant 0 : i32
    return %arg0, %c0_i32 : i32, i32
  }
}

</mosaic_0001>

<llo_original>
// kernel: tpu_custom_call.1
$region0: #{tpu_custom_call.1}
  #allocation0 [shape = 'u32[]', space=smem, size = 0x4, offset = 0x4, fixed_abs, tag = 'smem constant byte address 0x4 - core index']
  #allocation1 [shape = 'u32[72,128]{1,0:T(1,128)}', space=vmem, size = 0x9000, scoped, tag = 'internal scratch']
  %s0 = inlined_call_operand.hbm [shape: f32[1,2048], index: 0, kind: input, shape index: {}]
  %s1 = inlined_call_operand.hbm [shape: f32[1,2048], index: 1, kind: output, shape index: {}]
  %s2 = sld [smem:[#allocation0]]
  $region18: #{tpu_custom_call.1} parent=0
    _
  %s4 = ssub.s32 1, %s2
  %s5 = scalar_select 0, %s4, %s2
  $region1: #{tpu_custom_call.1} parent=0
    #allocation2 [shape = 'u8[8192]{0}', space=vmem, size = 0x2000, scoped, tag = 'input window, operand 0, single buffered']
    #allocation3 [shape = 's32[1]{0}', space=sflag, size = 0x4, scoped, tag = 'scoped memory for tpu_custom_call.1']
    #allocation4 [shape = 's32[1]{0}', space=sflag, size = 0x4, scoped, tag = 'scoped memory for tpu_custom_call.1']
    #allocation5 [shape = 'u8[8192]{0}', space=vmem, size = 0x2000, scoped, tag = 'output window, operand 0, single buffered']
    %6 = vsyncpa [#allocation3], 0
    %7 = vsyncpa [#allocation4], 0
    // Predicated region
    $region2: #{tpu_custom_call.1} parent=1 // pred_check
      _
    $region3: #{tpu_custom_call.1} parent=1 // pred_check_branch
      %9 = sbr.rel (0) target = $region5
    $region4: #{tpu_custom_call.1} parent=1 // pred_region
      %11 = vsyncadd [#allocation3], 0
      %s13 = sshll.u32 %s0, 4
      %s14 = int_to_ptr.hbm [resolvable:$true] %s13
      %s15 = sshll.u32 [#allocation2], 4
      %s16 = int_to_ptr.vmem [resolvable:$true] %s15
      %18 = dma.hbm_to_vmem [thread:$0]  %s14, 256, %s16, [#allocation3]
    $region5: #{tpu_custom_call.1} parent=1 // pred_fallthru
      _
    // Predicated region
    $region6: #{tpu_custom_call.1} parent=1 // pred_check
      _
    $region7: #{tpu_custom_call.1} parent=1 // pred_check_branch
      %20 = sbr.rel (0) target = $region9
    $region8: #{tpu_custom_call.1} parent=1 // pred_region
      %22 = dma.done [#allocation3], 256
    $region9: #{tpu_custom_call.1} parent=1 // pred_fallthru
      _
    %v23 = vld [vmem:[#allocation2] sm:$0xff]
    %v24 = vld [vmem:[#allocation2 + $0x8] sm:$0xff]
    %25 = vst [vmem:[#allocation5] sm:$0xff] %v23
    %26 = vst [vmem:[#allocation5 + $0x8] sm:$0xff] %v24
    // Predicated region
    $region10: #{tpu_custom_call.1} parent=1 // pred_check
      _
    $region11: #{tpu_custom_call.1} parent=1 // pred_check_branch
      %28 = sbr.rel (0) target = $region13
    $region12: #{tpu_custom_call.1} parent=1 // pred_region
      %30 = vsyncadd [#allocation4], 0
      %s32 = sshll.u32 [#allocation5], 4
      %s33 = int_to_ptr.vmem [resolvable:$true] %s32
      %s34 = sshll.u32 %s1, 4
      %s35 = int_to_ptr.hbm [resolvable:$true] %s34
      %37 = dma.vmem_to_hbm [thread:$0]  %s33, 256, %s35, [#allocation4]
    $region13: #{tpu_custom_call.1} parent=1 // pred_fallthru
      _
    // Predicated region
    $region14: #{tpu_custom_call.1} parent=1 // pred_check
      _
    $region15: #{tpu_custom_call.1} parent=1 // pred_check_branch
      %39 = sbr.rel (0) target = $region17
    $region16: #{tpu_custom_call.1} parent=1 // pred_region
      %41 = dma.done [#allocation4], 256
    $region17: #{tpu_custom_call.1} parent=1 // pred_fallthru
      _
    %42 = vsyncpa [#allocation3], 1
    %43 = vsyncpa [#allocation4], 1

</llo_original>
